<compile_context>
chip_gen: v7x
topology: tpu7x:2x2x1
jax: 0.10.0
libtpu: 0.0.40
codegen_flags: <defaults>
</compile_context>

<pallas_src>
import functools

import jax
import jax.numpy as jnp
from jax import lax
from jax.experimental import pallas as pl
from jax.experimental.pallas import tpu as pltpu


def _batchnorm_1pass(v, eps):
    """Affine-free BatchNorm1d, training-mode biased batch stats over (N, L).

    Single pass: sum + sum-of-squares (halves the reduction work vs. mean->var);
    the cross-lane reduces ride the XLU, rsqrt rides the EUP.
    """
    n, _, l = v.shape
    inv_cnt = 1.0 / float(n * l)
    mu = jnp.sum(v, axis=(0, 2), keepdims=True) * inv_cnt          # (1, B, 1)
    ex2 = jnp.sum(v * v, axis=(0, 2), keepdims=True) * inv_cnt     # E[x^2]
    var = jnp.maximum(ex2 - mu * mu, 0.0)
    return (v - mu) * lax.rsqrt(var + eps)


def _spatio_temporal_kernel(x_ref, ws_ref, bs_ref, wt_ref, bt_ref, o_ref, *,
                            filter_length, use_spatial_bias, use_temporal_bias,
                            spatial_bn, temporal_bn, nonlinearity_kind, eps):
    x = x_ref[...].astype(jnp.float32)          # (N, C, L)  -- L on lanes
    w_s = ws_ref[...].astype(jnp.float32)       # (B, C)
    w_t = wt_ref[...].astype(jnp.float32)       # (B, K)
    N, _, L = x.shape
    B = w_s.shape[0]
    K = filter_length

    # ---- spatial 1x1 conv: per-batch (B, C) @ (C, L) matmul on the MXU ----
    y = jnp.stack(
        [jnp.dot(w_s, x[n], preferred_element_type=jnp.float32) for n in range(N)],
        axis=0)                                  # (N, B, L)

    if use_spatial_bias and not spatial_bn:
        # A per-channel constant bias is exactly cancelled by the affine-free BN mean
        # subtraction, so only add it on the no-BN path (saves a full-tile vadd + 1 input read).
        y = y + bs_ref[...][None, :, :]
    if spatial_bn:
        y = _batchnorm_1pass(y, eps)

    # ---- temporal depthwise 'same' conv: K rolled taps + boundary zero-masks ----
    # out[n, b, t] = sum_k w_t[b, k] * y[n, b, t + k - pad_l]   (zero outside [0, L))
    pad_l = (K - 1) // 2
    t_idx = lax.broadcasted_iota(jnp.int32, (1, 1, L), 2)
    acc = jnp.zeros((N, B, L), jnp.float32)
    for k in range(K):                           # K is small -> unrolled at trace time
        shift = pad_l - k                        # tap k reads y[t - shift]
        rolled = y if shift % L == 0 else pltpu.roll(y, shift=shift % L, axis=2)
        if shift > 0:
            tap = jnp.where(t_idx >= shift, rolled, 0.0)
        elif shift < 0:
            tap = jnp.where(t_idx < L + shift, rolled, 0.0)
        else:
            tap = rolled
        acc = acc + w_t[:, k][None, :, None] * tap

    if use_temporal_bias and not temporal_bn:
        acc = acc + bt_ref[...][None, :, :]
    if temporal_bn:
        acc = _batchnorm_1pass(acc, eps)

    if nonlinearity_kind == "relu":
        acc = jnp.maximum(acc, 0.0)
    elif nonlinearity_kind == "abs":             # nn.LeakyReLU(negative_slope=-1) == |x|
        acc = jnp.abs(acc)
    # None -> identity

    o_ref[...] = acc.astype(o_ref.dtype)


def spatio_temporal_block(x, spatial_weight, spatial_bias, temporal_weight,
                          temporal_bias=None, *, temporal_length,
                          spatial_batch_norm=True, temporal_batch_norm=True,
                          temporal_nonlinearity="abs", padding="same", eps=1e-5):
    """x: (N, C_eeg, L); spatial_weight: (B, C_eeg, 1); temporal_weight: (B, 1, K)."""
    # TODO(synk): only padding='same' is fused here; 'valid'/int padding and BatchNorm
    # eval-mode (running stats) paths are not implemented.
    assert padding == "same"
    N, C, L = x.shape
    B = spatial_weight.shape[0]
    K = temporal_length
    assert spatial_weight.shape == (B, C, 1) and temporal_weight.shape == (B, 1, K)

    w_s = spatial_weight.reshape(B, C).astype(jnp.float32)
    w_t = temporal_weight.reshape(B, K).astype(jnp.float32)
    b_s = (spatial_bias if spatial_bias is not None
           else jnp.zeros((B,), jnp.float32)).reshape(B, 1).astype(jnp.float32)
    b_t = (temporal_bias if temporal_bias is not None
           else jnp.zeros((B,), jnp.float32)).reshape(B, 1).astype(jnp.float32)

    kernel = functools.partial(
        _spatio_temporal_kernel,
        filter_length=K,
        use_spatial_bias=spatial_bias is not None,
        use_temporal_bias=temporal_bias is not None,
        spatial_bn=spatial_batch_norm,
        temporal_bn=temporal_batch_norm,
        nonlinearity_kind=temporal_nonlinearity,
        eps=eps,
    )

    # The whole (N, C, L) problem fits comfortably in VMEM -> one fused, grid-less block.
    # Both BatchNorms need statistics over the full (N, L) extent, so tiling L would need a
    # separate stats pass / cross-tile accumulation.
    # TODO(synk): for long recordings (L >> VMEM) split into a stats pass + a tiled normalize
    # pass with an L grid and a (K-1)-element halo.
    return pl.pallas_call(
        kernel,
        out_shape=jax.ShapeDtypeStruct((N, B, L), x.dtype),
        in_specs=[
            pl.BlockSpec(x.shape, lambda: (0, 0, 0)),
            pl.BlockSpec(w_s.shape, lambda: (0, 0)),
            pl.BlockSpec(b_s.shape, lambda: (0, 0)),
            pl.BlockSpec(w_t.shape, lambda: (0, 0)),
            pl.BlockSpec(b_t.shape, lambda: (0, 0)),
        ],
        out_specs=pl.BlockSpec((N, B, L), lambda: (0, 0, 0)),
        compiler_params=pltpu.CompilerParams(vmem_limit_bytes=32 * 1024 * 1024),
    )(x, w_s, b_s, w_t, b_t)


def _reference(x, ws, bs, wt, *, K, eps=1e-5):
    """Pure-JAX reference of SpatioTemporalBlock.forward (no torch)."""
    B = ws.shape[0]
    y = jnp.einsum("bc,ncl->nbl", ws, x, precision=lax.Precision.HIGHEST)
    y = y + bs[None, :, None]
    mu = y.mean(axis=(0, 2), keepdims=True)
    var = ((y - mu) ** 2).mean(axis=(0, 2), keepdims=True)
    y = (y - mu) / jnp.sqrt(var + eps)
    pad_l = (K - 1) // 2
    z = lax.conv_general_dilated(
        y, wt.reshape(B, 1, K), window_strides=(1,),
        padding=[(pad_l, K - 1 - pad_l)],
        dimension_numbers=("NCH", "OIH", "NCH"),
        feature_group_count=B,
        precision=lax.Precision.HIGHEST)
    mu = z.mean(axis=(0, 2), keepdims=True)
    var = ((z - mu) ** 2).mean(axis=(0, 2), keepdims=True)
    z = (z - mu) / jnp.sqrt(var + eps)
    return jnp.abs(z)


if __name__ == "__main__":
    # SpatioTemporalBlock(n_eeg_channels=8, n_branches=4, temporal_length=5) defaults:
    # spatial_bias=True, temporal_bias=False, both batch-norms on, nonlinearity='abs',
    # padding='same'.  L=128 keeps the time axis lane-dense.
    N, C, B, L, K = 2, 8, 4, 128, 5

    key = jax.random.PRNGKey(0)
    kx, kws, kbs, kwt = jax.random.split(key, 4)
    x = jax.random.normal(kx, (N, C, L), dtype=jnp.float32)
    spatial_weight = 0.3 * jax.random.normal(kws, (B, C, 1), dtype=jnp.float32)
    spatial_bias = 0.1 * jax.random.normal(kbs, (B,), dtype=jnp.float32)
    temporal_weight = 0.3 * jax.random.normal(kwt, (B, 1, K), dtype=jnp.float32)

    out = spatio_temporal_block(
        x, spatial_weight, spatial_bias, temporal_weight, None,
        temporal_length=K,
        spatial_batch_norm=True, temporal_batch_norm=True,
        temporal_nonlinearity="abs", padding="same")
    out = jax.block_until_ready(out)

    ref = _reference(x, spatial_weight.reshape(B, C), spatial_bias, temporal_weight, K=K)
    assert out.shape == (N, B, L), out.shape
    max_err = float(jnp.max(jnp.abs(out - ref)))
    assert jnp.allclose(out, ref, atol=1e-4, rtol=1e-4), max_err

    print("KERNEL_OK")
</pallas_src>

<mosaic_0001>
module attributes {stable_mosaic.version = 11 : i64} {
  func.func @_spatio_temporal_kernel(%arg0: memref<2x8x128xf32, #tpu.memory_space<vmem>>, %arg1: memref<4x8xf32, #tpu.memory_space<vmem>>, %arg2: memref<4x1xf32, #tpu.memory_space<vmem>>, %arg3: memref<4x5xf32, #tpu.memory_space<vmem>>, %arg4: memref<4x1xf32, #tpu.memory_space<vmem>>, %arg5: memref<2x4x128xf32, #tpu.memory_space<vmem>>) attributes {dimension_semantics = [], scalar_prefetch = 0 : i64, scratch_operands = 0 : i64, tpu.core_type = #tpu.core_type<tc>} {
    %c0 = arith.constant 0 : index
    %c0_0 = arith.constant 0 : index
    %c0_1 = arith.constant 0 : index
    %0 = vector.load %arg0[%c0, %c0_0, %c0_1] : memref<2x8x128xf32, #tpu.memory_space<vmem>>, vector<2x8x128xf32>
    %c0_2 = arith.constant 0 : index
    %c0_3 = arith.constant 0 : index
    %1 = vector.load %arg1[%c0_2, %c0_3] : memref<4x8xf32, #tpu.memory_space<vmem>>, vector<4x8xf32>
    %c0_4 = arith.constant 0 : index
    %c0_5 = arith.constant 0 : index
    %2 = vector.load %arg3[%c0_4, %c0_5] : memref<4x5xf32, #tpu.memory_space<vmem>>, vector<4x5xf32>
    %3 = vector.extract_strided_slice %0 {offsets = [0, 0, 0], sizes = [1, 8, 128], strides = [1, 1, 1]} : vector<2x8x128xf32> to vector<1x8x128xf32>
    %4 = vector.shape_cast %3 : vector<1x8x128xf32> to vector<8x128xf32>
    %cst = arith.constant dense<0.000000e+00> : vector<4x128xf32>
    %5 = tpu.matmul %1, %4, %cst {dimension_numbers = #tpu.dot_dimension_numbers<[1], [0], [0], [1], [0, 0, 1, 1], [], []>} : vector<4x8xf32>, vector<8x128xf32>, vector<4x128xf32> -> vector<4x128xf32>
    %6 = vector.extract_strided_slice %0 {offsets = [1, 0, 0], sizes = [1, 8, 128], strides = [1, 1, 1]} : vector<2x8x128xf32> to vector<1x8x128xf32>
    %7 = vector.shape_cast %6 : vector<1x8x128xf32> to vector<8x128xf32>
    %cst_6 = arith.constant dense<0.000000e+00> : vector<4x128xf32>
    %8 = tpu.matmul %1, %7, %cst_6 {dimension_numbers = #tpu.dot_dimension_numbers<[1], [0], [0], [1], [0, 0, 1, 1], [], []>} : vector<4x8xf32>, vector<8x128xf32>, vector<4x128xf32> -> vector<4x128xf32>
    %9 = vector.shape_cast %5 : vector<4x128xf32> to vector<1x4x128xf32>
    %10 = vector.shape_cast %8 : vector<4x128xf32> to vector<1x4x128xf32>
    %11 = tpu.concatenate %9, %10 in 0 : vector<1x4x128xf32>, vector<1x4x128xf32> -> vector<2x4x128xf32>
    %cst_7 = arith.constant dense<0.000000e+00> : vector<4xf32>
    %12 = vector.multi_reduction <add>, %11, %cst_7 [0, 2] : vector<2x4x128xf32> to vector<4xf32>
    %13 = vector.shape_cast %12 : vector<4xf32> to vector<1x4x1xf32>
    %cst_8 = arith.constant 3.906250e-03 : f32
    %14 = vector.broadcast %cst_8 : f32 to vector<1x4x1xf32>
    %15 = arith.mulf %13, %14 : vector<1x4x1xf32>
    %16 = arith.mulf %11, %11 : vector<2x4x128xf32>
    %cst_9 = arith.constant dense<0.000000e+00> : vector<4xf32>
    %17 = vector.multi_reduction <add>, %16, %cst_9 [0, 2] : vector<2x4x128xf32> to vector<4xf32>
    %18 = vector.shape_cast %17 : vector<4xf32> to vector<1x4x1xf32>
    %cst_10 = arith.constant 3.906250e-03 : f32
    %19 = vector.broadcast %cst_10 : f32 to vector<1x4x1xf32>
    %20 = arith.mulf %18, %19 : vector<1x4x1xf32>
    %21 = arith.mulf %15, %15 : vector<1x4x1xf32>
    %22 = arith.subf %20, %21 : vector<1x4x1xf32>
    %cst_11 = arith.constant 0.000000e+00 : f32
    %23 = vector.broadcast %cst_11 : f32 to vector<1x4x1xf32>
    %24 = arith.maximumf %22, %23 : vector<1x4x1xf32>
    %25 = vector.broadcast %15 : vector<1x4x1xf32> to vector<2x4x128xf32>
    %26 = arith.subf %11, %25 : vector<2x4x128xf32>
    %cst_12 = arith.constant 9.99999974E-6 : f32
    %27 = vector.broadcast %cst_12 : f32 to vector<1x4x1xf32>
    %28 = arith.addf %24, %27 : vector<1x4x1xf32>
    %29 = math.rsqrt %28 : vector<1x4x1xf32>
    %30 = vector.broadcast %29 : vector<1x4x1xf32> to vector<2x4x128xf32>
    %31 = arith.mulf %26, %30 : vector<2x4x128xf32>
    %32 = tpu.iota {dimensions = array<i32: 2>} : vector<1x1x128xi32>
    %cst_13 = arith.constant 0.000000e+00 : f32
    %33 = vector.broadcast %cst_13 : f32 to vector<2x4x128xf32>
    %c2_i32 = arith.constant 2 : i32
    %34 = tpu.dynamic_rotate %31 by %c2_i32 dim 2 : vector<2x4x128xf32>, i32 -> vector<2x4x128xf32>
    %c2_i32_14 = arith.constant 2 : i32
    %35 = vector.broadcast %c2_i32_14 : i32 to vector<1x1x128xi32>
    %36 = arith.cmpi sge, %32, %35 : vector<1x1x128xi32>
    %cst_15 = arith.constant 0.000000e+00 : f32
    %37 = vector.shape_cast %36 : vector<1x1x128xi1> to vector<1x1x128xi1>
    %38 = vector.broadcast %37 : vector<1x1x128xi1> to vector<2x4x128xi1>
    %39 = vector.broadcast %cst_15 : f32 to vector<2x4x128xf32>
    %40 = arith.select %38, %34, %39 : vector<2x4x128xi1>, vector<2x4x128xf32>
    %41 = vector.extract_strided_slice %2 {offsets = [0, 0], sizes = [4, 1], strides = [1, 1]} : vector<4x5xf32> to vector<4x1xf32>
    %42 = vector.shape_cast %41 : vector<4x1xf32> to vector<4xf32>
    %43 = vector.shape_cast %42 : vector<4xf32> to vector<1x4x1xf32>
    %44 = vector.broadcast %43 : vector<1x4x1xf32> to vector<2x4x128xf32>
    %45 = arith.mulf %44, %40 : vector<2x4x128xf32>
    %46 = arith.addf %33, %45 : vector<2x4x128xf32>
    %c1_i32 = arith.constant 1 : i32
    %47 = tpu.dynamic_rotate %31 by %c1_i32 dim 2 : vector<2x4x128xf32>, i32 -> vector<2x4x128xf32>
    %c1_i32_16 = arith.constant 1 : i32
    %48 = vector.broadcast %c1_i32_16 : i32 to vector<1x1x128xi32>
    %49 = arith.cmpi sge, %32, %48 : vector<1x1x128xi32>
    %cst_17 = arith.constant 0.000000e+00 : f32
    %50 = vector.shape_cast %49 : vector<1x1x128xi1> to vector<1x1x128xi1>
    %51 = vector.broadcast %50 : vector<1x1x128xi1> to vector<2x4x128xi1>
    %52 = vector.broadcast %cst_17 : f32 to vector<2x4x128xf32>
    %53 = arith.select %51, %47, %52 : vector<2x4x128xi1>, vector<2x4x128xf32>
    %54 = vector.extract_strided_slice %2 {offsets = [0, 1], sizes = [4, 1], strides = [1, 1]} : vector<4x5xf32> to vector<4x1xf32>
    %55 = vector.shape_cast %54 : vector<4x1xf32> to vector<4xf32>
    %56 = vector.shape_cast %55 : vector<4xf32> to vector<1x4x1xf32>
    %57 = vector.broadcast %56 : vector<1x4x1xf32> to vector<2x4x128xf32>
    %58 = arith.mulf %57, %53 : vector<2x4x128xf32>
    %59 = arith.addf %46, %58 : vector<2x4x128xf32>
    %60 = vector.extract_strided_slice %2 {offsets = [0, 2], sizes = [4, 1], strides = [1, 1]} : vector<4x5xf32> to vector<4x1xf32>
    %61 = vector.shape_cast %60 : vector<4x1xf32> to vector<4xf32>
    %62 = vector.shape_cast %61 : vector<4xf32> to vector<1x4x1xf32>
    %63 = vector.broadcast %62 : vector<1x4x1xf32> to vector<2x4x128xf32>
    %64 = arith.mulf %63, %31 : vector<2x4x128xf32>
    %65 = arith.addf %59, %64 : vector<2x4x128xf32>
    %c127_i32 = arith.constant 127 : i32
    %66 = tpu.dynamic_rotate %31 by %c127_i32 dim 2 : vector<2x4x128xf32>, i32 -> vector<2x4x128xf32>
    %c127_i32_18 = arith.constant 127 : i32
    %67 = vector.broadcast %c127_i32_18 : i32 to vector<1x1x128xi32>
    %68 = arith.cmpi slt, %32, %67 : vector<1x1x128xi32>
    %cst_19 = arith.constant 0.000000e+00 : f32
    %69 = vector.shape_cast %68 : vector<1x1x128xi1> to vector<1x1x128xi1>
    %70 = vector.broadcast %69 : vector<1x1x128xi1> to vector<2x4x128xi1>
    %71 = vector.broadcast %cst_19 : f32 to vector<2x4x128xf32>
    %72 = arith.select %70, %66, %71 : vector<2x4x128xi1>, vector<2x4x128xf32>
    %73 = vector.extract_strided_slice %2 {offsets = [0, 3], sizes = [4, 1], strides = [1, 1]} : vector<4x5xf32> to vector<4x1xf32>
    %74 = vector.shape_cast %73 : vector<4x1xf32> to vector<4xf32>
    %75 = vector.shape_cast %74 : vector<4xf32> to vector<1x4x1xf32>
    %76 = vector.broadcast %75 : vector<1x4x1xf32> to vector<2x4x128xf32>
    %77 = arith.mulf %76, %72 : vector<2x4x128xf32>
    %78 = arith.addf %65, %77 : vector<2x4x128xf32>
    %c126_i32 = arith.constant 126 : i32
    %79 = tpu.dynamic_rotate %31 by %c126_i32 dim 2 : vector<2x4x128xf32>, i32 -> vector<2x4x128xf32>
    %c126_i32_20 = arith.constant 126 : i32
    %80 = vector.broadcast %c126_i32_20 : i32 to vector<1x1x128xi32>
    %81 = arith.cmpi slt, %32, %80 : vector<1x1x128xi32>
    %cst_21 = arith.constant 0.000000e+00 : f32
    %82 = vector.shape_cast %81 : vector<1x1x128xi1> to vector<1x1x128xi1>
    %83 = vector.broadcast %82 : vector<1x1x128xi1> to vector<2x4x128xi1>
    %84 = vector.broadcast %cst_21 : f32 to vector<2x4x128xf32>
    %85 = arith.select %83, %79, %84 : vector<2x4x128xi1>, vector<2x4x128xf32>
    %86 = vector.extract_strided_slice %2 {offsets = [0, 4], sizes = [4, 1], strides = [1, 1]} : vector<4x5xf32> to vector<4x1xf32>
    %87 = vector.shape_cast %86 : vector<4x1xf32> to vector<4xf32>
    %88 = vector.shape_cast %87 : vector<4xf32> to vector<1x4x1xf32>
    %89 = vector.broadcast %88 : vector<1x4x1xf32> to vector<2x4x128xf32>
    %90 = arith.mulf %89, %85 : vector<2x4x128xf32>
    %91 = arith.addf %78, %90 : vector<2x4x128xf32>
    %cst_22 = arith.constant dense<0.000000e+00> : vector<4xf32>
    %92 = vector.multi_reduction <add>, %91, %cst_22 [0, 2] : vector<2x4x128xf32> to vector<4xf32>
    %93 = vector.shape_cast %92 : vector<4xf32> to vector<1x4x1xf32>
    %cst_23 = arith.constant 3.906250e-03 : f32
    %94 = vector.broadcast %cst_23 : f32 to vector<1x4x1xf32>
    %95 = arith.mulf %93, %94 : vector<1x4x1xf32>
    %96 = arith.mulf %91, %91 : vector<2x4x128xf32>
    %cst_24 = arith.constant dense<0.000000e+00> : vector<4xf32>
    %97 = vector.multi_reduction <add>, %96, %cst_24 [0, 2] : vector<2x4x128xf32> to vector<4xf32>
    %98 = vector.shape_cast %97 : vector<4xf32> to vector<1x4x1xf32>
    %cst_25 = arith.constant 3.906250e-03 : f32
    %99 = vector.broadcast %cst_25 : f32 to vector<1x4x1xf32>
    %100 = arith.mulf %98, %99 : vector<1x4x1xf32>
    %101 = arith.mulf %95, %95 : vector<1x4x1xf32>
    %102 = arith.subf %100, %101 : vector<1x4x1xf32>
    %cst_26 = arith.constant 0.000000e+00 : f32
    %103 = vector.broadcast %cst_26 : f32 to vector<1x4x1xf32>
    %104 = arith.maximumf %102, %103 : vector<1x4x1xf32>
    %105 = vector.broadcast %95 : vector<1x4x1xf32> to vector<2x4x128xf32>
    %106 = arith.subf %91, %105 : vector<2x4x128xf32>
    %cst_27 = arith.constant 9.99999974E-6 : f32
    %107 = vector.broadcast %cst_27 : f32 to vector<1x4x1xf32>
    %108 = arith.addf %104, %107 : vector<1x4x1xf32>
    %109 = math.rsqrt %108 : vector<1x4x1xf32>
    %110 = vector.broadcast %109 : vector<1x4x1xf32> to vector<2x4x128xf32>
    %111 = arith.mulf %106, %110 : vector<2x4x128xf32>
    %112 = math.absf %111 : vector<2x4x128xf32>
    %c0_28 = arith.constant 0 : index
    %c0_29 = arith.constant 0 : index
    %c0_30 = arith.constant 0 : index
    %113 = vector.load %arg5[%c0_28, %c0_29, %c0_30] : memref<2x4x128xf32, #tpu.memory_space<vmem>>, vector<2x4x128xf32>
    tpu.vector_store %arg5[%c0_28, %c0_29, %c0_30], %112 {strides = array<i32>} : memref<2x4x128xf32, #tpu.memory_space<vmem>>, vector<2x4x128xf32>,
    return
  }
}

</mosaic_0001>

<llo_original>
// kernel: tpu_custom_call.1
$region0: #{tpu_custom_call.1}
  #allocation0 [shape = 'u32[]', space=smem, size = 0x4, offset = 0x4, fixed_abs, tag = 'smem constant byte address 0x4 - core index']
  #allocation1 [shape = 'u32[144,128]{1,0:T(1,128)}', space=vmem, size = 0x12000, scoped, tag = 'internal scratch']
  %s0 = inlined_call_operand.hbm [shape: f32[2,8,128], index: 0, kind: input, shape index: {}]
  %s1 = inlined_call_operand.vmem [shape: f32[4,8], index: 1, kind: input, shape index: {}]
  %s2 = inlined_call_operand.vmem [shape: f32[4,1], index: 2, kind: input, shape index: {}]
  %s3 = inlined_call_operand.vmem [shape: f32[4,5], index: 3, kind: input, shape index: {}]
  %s4 = inlined_call_operand.vmem [shape: f32[4,1], index: 4, kind: input, shape index: {}]
  %s5 = inlined_call_operand.hbm [shape: f32[2,4,128], index: 5, kind: output, shape index: {}]
  %s6 = sld [smem:[#allocation0]]
  $region34: #{tpu_custom_call.1} parent=0
    _
  %s8 = ssub.s32 1, %s6
  %s9 = scalar_select 0, %s8, %s6
  $region1: #{tpu_custom_call.1} parent=0
    #allocation2 [shape = 'u8[8192]{0}', space=vmem, size = 0x2000, scoped, tag = 'input window, operand 0, single buffered']
    #allocation3 [shape = 's32[1]{0}', space=sflag, size = 0x4, scoped, tag = 'scoped memory for tpu_custom_call.1']
    #allocation4 [shape = 's32[1]{0}', space=sflag, size = 0x4, scoped, tag = 'scoped memory for tpu_custom_call.1']
    #allocation5 [shape = 'u8[4096]{0}', space=vmem, size = 0x1000, scoped, tag = 'output window, operand 0, single buffered']
    %10 = vsyncpa [#allocation3], 0
    %11 = vsyncpa [#allocation4], 0
    // Predicated region
    $region2: #{tpu_custom_call.1} parent=1 // pred_check
      _
    $region3: #{tpu_custom_call.1} parent=1 // pred_check_branch
      %13 = sbr.rel (0) target = $region5
    $region4: #{tpu_custom_call.1} parent=1 // pred_region
      %s15 = ssub.s32 256, 256
      %16 = vsyncadd [#allocation3], %s15
      %s17 = sshll.u32 [#allocation2], 4
      %s18 = int_to_ptr.vmem [resolvable:$true] %s17
      %23 = dma.hbm_to_vmem [thread:$0]  %s0, 256, %s18, [#allocation3], 128, 128, 8
    $region5: #{tpu_custom_call.1} parent=1 // pred_fallthru
      _
    // Predicated region
    $region6: #{tpu_custom_call.1} parent=1 // pred_check
      _
    $region7: #{tpu_custom_call.1} parent=1 // pred_check_branch
      %25 = sbr.rel (0) target = $region9
    $region8: #{tpu_custom_call.1} parent=1 // pred_region
      _
    $region9: #{tpu_custom_call.1} parent=1 // pred_fallthru
      _
    // Predicated region
    $region10: #{tpu_custom_call.1} parent=1 // pred_check
      _
    $region11: #{tpu_custom_call.1} parent=1 // pred_check_branch
      %27 = sbr.rel (0) target = $region13
    $region12: #{tpu_custom_call.1} parent=1 // pred_region
      _
    $region13: #{tpu_custom_call.1} parent=1 // pred_fallthru
      _
    // Predicated region
    $region14: #{tpu_custom_call.1} parent=1 // pred_check
      _
    $region15: #{tpu_custom_call.1} parent=1 // pred_check_branch
      %29 = sbr.rel (0) target = $region17
    $region16: #{tpu_custom_call.1} parent=1 // pred_region
      _
    $region17: #{tpu_custom_call.1} parent=1 // pred_fallthru
      _
    // Predicated region
    $region18: #{tpu_custom_call.1} parent=1 // pred_check
      _
    $region19: #{tpu_custom_call.1} parent=1 // pred_check_branch
      %31 = sbr.rel (0) target = $region21
    $region20: #{tpu_custom_call.1} parent=1 // pred_region
      _
    $region21: #{tpu_custom_call.1} parent=1 // pred_fallthru
      _
    // Predicated region
    $region22: #{tpu_custom_call.1} parent=1 // pred_check
      _
    $region23: #{tpu_custom_call.1} parent=1 // pred_check_branch
      %33 = sbr.rel (0) target = $region25
    $region24: #{tpu_custom_call.1} parent=1 // pred_region
      %34 = dma.done [#allocation3], 256
    $region25: #{tpu_custom_call.1} parent=1 // pred_fallthru
      _
    %v35 = vld [vmem:[#allocation2] sm:$0xff]
    %v36 = vld [vmem:[#allocation2 + $0x8] sm:$0xff]
    %v37 = vld [vmem:[%s1] sm:$0xf]
    %v38 = vld [vmem:[%s3] sm:$0xf]
    %vm39 = vcmask 64512
    %v41 = vsel %vm39, %v37, 0
    %43 = vmatprep.subr.mxu0 0.0
    %44 = vmatpush1.msra.mxu0 %v35
    %45 = vmatprep.subr.mxu0 0.0
    %46 = vmatpush1.msra.mxu0 0.0
    %47 = vmatprep.subr.mxu0 0.0
    %48 = vmatpush1.msra.mxu0 0.0
    %49 = vmatprep.subr.mxu0 0.0
    %50 = vmatpush1.msra.mxu0 0.0
    %51 = vmatprep.subr.mxu0 0.0
    %52 = vmatpush1.msra.mxu0 0.0
    %53 = vmatprep.subr.mxu0 0.0
    %54 = vmatpush1.msra.mxu0 0.0
    %55 = vmatprep.subr.mxu0 0.0
    %56 = vmatpush1.msra.mxu0 0.0
    %57 = vmatprep.subr.mxu0 0.0
    %58 = vmatpush1.msra.mxu0 0.0
    %59 = vmatprep.subr.mxu0 0.0
    %60 = vmatpush1.msra.mxu0 0.0
    %61 = vmatprep.subr.mxu0 0.0
    %62 = vmatpush1.msra.mxu0 0.0
    %63 = vmatprep.subr.mxu0 0.0
    %64 = vmatpush1.msra.mxu0 0.0
    %65 = vmatprep.subr.mxu0 0.0
    %66 = vmatpush1.msra.mxu0 0.0
    %67 = vmatprep.subr.mxu0 0.0
    %68 = vmatpush1.msra.mxu0 0.0
    %69 = vmatprep.subr.mxu0 0.0
    %70 = vmatpush1.msra.mxu0 0.0
    %71 = vmatprep.subr.mxu0 0.0
    %72 = vmatpush1.msra.mxu0 0.0
    %73 = vmatprep.subr.mxu0 0.0
    %74 = vmatpush1.msra.mxu0 0.0
    %75 = vmatprep.subr.mxu0 0.0
    %76 = vmatpush1.msra.mxu0 0.0
    %77 = vmatprep.subr.mxu0 0.0
    %78 = vmatpush1.msra.mxu0 0.0
    %79 = vmatprep.subr.mxu0 0.0
    %80 = vmatpush1.msra.mxu0 0.0
    %81 = vmatprep.subr.mxu0 0.0
    %82 = vmatpush1.msra.mxu0 0.0
    %83 = vmatprep.subr.mxu0 0.0
    %84 = vmatpush1.msra.mxu0 0.0
    %85 = vmatprep.subr.mxu0 0.0
    %86 = vmatpush1.msra.mxu0 0.0
    %87 = vmatprep.subr.mxu0 0.0
    %88 = vmatpush1.msra.mxu0 0.0
    %89 = vmatprep.subr.mxu0 0.0
    %90 = vmatpush1.msra.mxu0 0.0
    %91 = vmatprep.subr.mxu0 0.0
    %92 = vmatpush1.msra.mxu0 0.0
    %93 = vmatprep.subr.mxu0 0.0
    %94 = vmatpush1.msra.mxu0 0.0
    %95 = vmatprep.subr.mxu0 0.0
    %96 = vmatpush1.msra.mxu0 0.0
    %97 = vmatprep.subr.mxu0 0.0
    %98 = vmatpush1.msra.mxu0 0.0
    %99 = vmatprep.subr.mxu0 0.0
    %100 = vmatpush1.msra.mxu0 0.0
    %101 = vmatprep.subr.mxu0 0.0
    %102 = vmatpush1.msra.mxu0 0.0
    %103 = vmatprep.subr.mxu0 0.0
    %104 = vmatpush1.msra.mxu0 0.0
    %105 = vmatprep.subr.mxu0 0.0
    %106 = vmatpush1.msra.mxu0 0.0
    %107 = vmatprep.mubr.f32.mxu0 0.0
    %108 = vmatmul.mubr.f32.gmra.mrb[0].mxu0 %v41
    %v109 = vpop.f32.mrb[0].mxu0
    %v110 = vadd.f32 0.0, %v109
    %v111 = vpop.f32.mrb[0].mxu0
    %112 = vdwg.mxu0
    %113 = vmatprep.subr.mxu0 0.0
    %114 = vmatpush1.msra.mxu0 %v36
    %115 = vmatprep.subr.mxu0 0.0
    %116 = vmatpush1.msra.mxu0 0.0
    %117 = vmatprep.subr.mxu0 0.0
    %118 = vmatpush1.msra.mxu0 0.0
    %119 = vmatprep.subr.mxu0 0.0
    %120 = vmatpush1.msra.mxu0 0.0
    %121 = vmatprep.subr.mxu0 0.0
    %122 = vmatpush1.msra.mxu0 0.0
    %123 = vmatprep.subr.mxu0 0.0
    %124 = vmatpush1.msra.mxu0 0.0
    %125 = vmatprep.subr.mxu0 0.0
    %126 = vmatpush1.msra.mxu0 0.0
    %127 = vmatprep.subr.mxu0 0.0
    %128 = vmatpush1.msra.mxu0 0.0
    %129 = vmatprep.subr.mxu0 0.0
    %130 = vmatpush1.msra.mxu0 0.0
    %131 = vmatprep.subr.mxu0 0.0
    %132 = vmatpush1.msra.mxu0 0.0
    %133 = vmatprep.subr.mxu0 0.0
    %134 = vmatpush1.msra.mxu0 0.0
    %135 = vmatprep.subr.mxu0 0.0
    %136 = vmatpush1.msra.mxu0 0.0
    %137 = vmatprep.subr.mxu0 0.0
    %138 = vmatpush1.msra.mxu0 0.0
    %139 = vmatprep.subr.mxu0 0.0
    %140 = vmatpush1.msra.mxu0 0.0
    %141 = vmatprep.subr.mxu0 0.0
    %142 = vmatpush1.msra.mxu0 0.0
    %143 = vmatprep.subr.mxu0 0.0
    %144 = vmatpush1.msra.mxu0 0.0
    %145 = vmatprep.subr.mxu0 0.0
    %146 = vmatpush1.msra.mxu0 0.0
    %147 = vmatprep.subr.mxu0 0.0
    %148 = vmatpush1.msra.mxu0 0.0
    %149 = vmatprep.subr.mxu0 0.0
    %150 = vmatpush1.msra.mxu0 0.0
    %151 = vmatprep.subr.mxu0 0.0
    %152 = vmatpush1.msra.mxu0 0.0
    %153 = vmatprep.subr.mxu0 0.0
    %154 = vmatpush1.msra.mxu0 0.0
    %155 = vmatprep.subr.mxu0 0.0
    %156 = vmatpush1.msra.mxu0 0.0
    %157 = vmatprep.subr.mxu0 0.0
    %158 = vmatpush1.msra.mxu0 0.0
    %159 = vmatprep.subr.mxu0 0.0
    %160 = vmatpush1.msra.mxu0 0.0
    %161 = vmatprep.subr.mxu0 0.0
    %162 = vmatpush1.msra.mxu0 0.0
    %163 = vmatprep.subr.mxu0 0.0
    %164 = vmatpush1.msra.mxu0 0.0
    %165 = vmatprep.subr.mxu0 0.0
    %166 = vmatpush1.msra.mxu0 0.0
    %167 = vmatprep.subr.mxu0 0.0
    %168 = vmatpush1.msra.mxu0 0.0
    %169 = vmatprep.subr.mxu0 0.0
    %170 = vmatpush1.msra.mxu0 0.0
    %171 = vmatprep.subr.mxu0 0.0
    %172 = vmatpush1.msra.mxu0 0.0
    %173 = vmatprep.subr.mxu0 0.0
    %174 = vmatpush1.msra.mxu0 0.0
    %175 = vmatprep.subr.mxu0 0.0
    %176 = vmatpush1.msra.mxu0 0.0
    %177 = vmatprep.mubr.f32.mxu0 0.0
    %178 = vmatmul.mubr.f32.gmra.mrb[0].mxu0 %v41
    %v179 = vpop.f32.mrb[0].mxu0
    %v180 = vadd.f32 0.0, %v179
    %v181 = vpop.f32.mrb[0].mxu0
    %182 = vdwg.mxu0
    %vm183 = vcmask 1043456
    %v184 = vsel %vm183, %v110, 0.0
    %v185 = vsel %vm183, %v180, 0.0
    %v186 = vadd.f32 %v184, %v185
    %187 = vadd.xlane.f32.xlu0 %v186
    %v188 = vpop.xlane.xlu0 %187
    %v189 = vmul.f32 %v188, 0.00390625
    %v190 = vmul.f32 %v110, %v110
    %v191 = vmul.f32 %v180, %v180
    %v192 = vsel %vm183, %v190, 0.0
    %v193 = vsel %vm183, %v191, 0.0
    %v194 = vadd.f32 %v192, %v193
    %195 = vadd.xlane.f32.xlu0 %v194
    %v196 = vpop.xlane.xlu0 %195
    %v197 = vmul.f32 %v196, 0.00390625
    %v198 = vmul.f32 %v189, %v189
    %v199 = vsub.f32 %v197, %v198
    %v200 = vmax.f32 %v199, 0.0
    %v201 = vsub.f32 %v110, %v189
    %v202 = vsub.f32 %v180, %v189
    %v203 = vadd.f32 %v200, 1e-05
    %v204 = vrsqrt.pop %v203
    %v205 = vmul.f32 %v201, %v204
    %v206 = vmul.f32 %v202, %v204
    %v207 = vlaneseq
    %v208 = vand.u32 %v207, 127
    %209 = vrot.lane.b32.xlu0 %v205, 2
    %v210 = vpop.permute.xlu0 %209
    %211 = vrot.lane.b32.xlu0 %v206, 2
    %v212 = vpop.permute.xlu0 %211
    %vm213 = vcmp.ge.s32.totalorder %v208, 2
    %v214 = vsel %vm213, 1, 0
    %vm215 = vcmp.eq.s32.totalorder %v214, 1
    %v216 = vsel %vm215, %v210, 0.0
    %v217 = vsel %vm215, %v212, 0.0
    %219 = vset.pattern.permute.xlu0 0
    %220 = vperm.xlu0 %219, %v38
    %v221 = vpop.permute.xlu0 %220
    %v223 = vmul.f32 %v221, %v216
    %v224 = vmul.f32 %v221, %v217
    %v225 = vadd.f32 %v223, 0.0
    %v226 = vadd.f32 %v224, 0.0
    %227 = vrot.lane.b32.xlu0 %v205, 1
    %v228 = vpop.permute.xlu0 %227
    %229 = vrot.lane.b32.xlu0 %v206, 1
    %v230 = vpop.permute.xlu0 %229
    %vm231 = vcmp.ge.s32.totalorder %v208, 1
    %v232 = vsel %vm231, 1, 0
    %vm233 = vcmp.eq.s32.totalorder %v232, 1
    %v234 = vsel %vm233, %v228, 0.0
    %v235 = vsel %vm233, %v230, 0.0
    %236 = vset.pattern.permute.xlu0 1
    %237 = vperm.xlu0 %236, %v38
    %v238 = vpop.permute.xlu0 %237
    %v240 = vmul.f32 %v238, %v234
    %v241 = vmul.f32 %v238, %v235
    %v242 = vadd.f32 %v225, %v240
    %v243 = vadd.f32 %v226, %v241
    %244 = vset.pattern.permute.xlu0 2
    %245 = vperm.xlu0 %244, %v38
    %v246 = vpop.permute.xlu0 %245
    %v248 = vmul.f32 %v246, %v205
    %v249 = vmul.f32 %v246, %v206
    %v250 = vadd.f32 %v242, %v248
    %v251 = vadd.f32 %v243, %v249
    %252 = vrot.lane.b32.xlu0 %v205, 127
    %v253 = vpop.permute.xlu0 %252
    %254 = vrot.lane.b32.xlu0 %v206, 127
    %v255 = vpop.permute.xlu0 %254
    %vm256 = vcmp.lt.s32.totalorder %v208, 127
    %v257 = vsel %vm256, 1, 0
    %vm258 = vcmp.eq.s32.totalorder %v257, 1
    %v259 = vsel %vm258, %v253, 0.0
    %v260 = vsel %vm258, %v255, 0.0
    %261 = vset.pattern.permute.xlu0 3
    %262 = vperm.xlu0 %261, %v38
    %v263 = vpop.permute.xlu0 %262
    %v265 = vmul.f32 %v263, %v259
    %v266 = vmul.f32 %v263, %v260
    %v267 = vadd.f32 %v250, %v265
    %v268 = vadd.f32 %v251, %v266
    %269 = vrot.lane.b32.xlu0 %v205, 126
    %v270 = vpop.permute.xlu0 %269
    %271 = vrot.lane.b32.xlu0 %v206, 126
    %v272 = vpop.permute.xlu0 %271
    %vm273 = vcmp.lt.s32.totalorder %v208, 126
    %v274 = vsel %vm273, 1, 0
    %vm275 = vcmp.eq.s32.totalorder %v274, 1
    %v276 = vsel %vm275, %v270, 0.0
    %v277 = vsel %vm275, %v272, 0.0
    %278 = vset.pattern.permute.xlu0 4
    %279 = vperm.xlu0 %278, %v38
    %v280 = vpop.permute.xlu0 %279
    %v282 = vmul.f32 %v280, %v276
    %v283 = vmul.f32 %v280, %v277
    %v284 = vadd.f32 %v267, %v282
    %v285 = vadd.f32 %v268, %v283
    %v286 = vsel %vm183, %v284, 0.0
    %v287 = vsel %vm183, %v285, 0.0
    %v288 = vadd.f32 %v286, %v287
    %289 = vadd.xlane.f32.xlu0 %v288
    %v290 = vpop.xlane.xlu0 %289
    %v291 = vmul.f32 %v290, 0.00390625
    %v292 = vmul.f32 %v284, %v284
    %v293 = vmul.f32 %v285, %v285
    %v294 = vsel %vm183, %v292, 0.0
    %v295 = vsel %vm183, %v293, 0.0
    %v296 = vadd.f32 %v294, %v295
    %297 = vadd.xlane.f32.xlu0 %v296
    %v298 = vpop.xlane.xlu0 %297
    %v299 = vmul.f32 %v298, 0.00390625
    %v300 = vmul.f32 %v291, %v291
    %v301 = vsub.f32 %v299, %v300
    %v302 = vmax.f32 %v301, 0.0
    %v303 = vsub.f32 %v284, %v291
    %v304 = vsub.f32 %v285, %v291
    %v305 = vadd.f32 %v302, 1e-05
    %v306 = vrsqrt.pop %v305
    %v307 = vmul.f32 %v303, %v306
    %v308 = vmul.f32 %v304, %v306
    %v309 = vand.u32 2147483647, %v307
    %v310 = vand.u32 2147483647, %v308
    %311 = vst [vmem:[#allocation5] sm:$0xf] %v309
    %312 = vst [vmem:[#allocation5 + $0x4] sm:$0xf] %v310
    // Predicated region
    $region26: #{tpu_custom_call.1} parent=1 // pred_check
      _
    $region27: #{tpu_custom_call.1} parent=1 // pred_check_branch
      %314 = sbr.rel (0) target = $region29
    $region28: #{tpu_custom_call.1} parent=1 // pred_region
      %s316 = ssub.s32 128, 128
      %317 = vsyncadd [#allocation4], %s316
      %s318 = sshll.u32 [#allocation5], 4
      %s319 = int_to_ptr.vmem [resolvable:$true] %s318
      %324 = dma.vmem_to_hbm [thread:$0]  %s319, 128, %s5, [#allocation4], 64, 64, 4
    $region29: #{tpu_custom_call.1} parent=1 // pred_fallthru
      _
    // Predicated region
    $region30: #{tpu_custom_call.1} parent=1 // pred_check
      _
    $region31: #{tpu_custom_call.1} parent=1 // pred_check_branch
      %326 = sbr.rel (0) target = $region33
    $region32: #{tpu_custom_call.1} parent=1 // pred_region
      %327 = dma.done [#allocation4], 128
    $region33: #{tpu_custom_call.1} parent=1 // pred_fallthru
      _
    %328 = vsyncpa [#allocation3], 1
    %329 = vsyncpa [#allocation4], 1

</llo_original>
